<compile_context>
chip_gen: v7x
topology: tpu7x:2x2x1
jax: 0.10.0
libtpu: 0.0.40
codegen_flags: <defaults>
</compile_context>

<pallas_src>
import functools

import jax
import jax.numpy as jnp
from jax.experimental import pallas as pl
from jax.experimental.pallas import tpu as pltpu


def _lsce_kernel(x_ref, t_ref, out_ref, *, ignore_index):
    """Per row-tile stats: [-sum_c log_softmax, -log_softmax[target]*valid, valid]."""
    x = x_ref[...]                                   # (TM, C) native dtype (f32/bf16)
    t = t_ref[...]                                   # (TM, 1) int32
    c = x.shape[-1]

    # ---- pass 1: native-dtype row max + one-hot target gather (VPU bf16 path
    # on v6e/v7x; 2x elements per vreg).  Gather is exact: one hit per row.
    m = jnp.max(x, axis=-1, keepdims=True).astype(jnp.float32)           # (TM, 1)
    col = jax.lax.broadcasted_iota(jnp.int32, x.shape, 1)                # (TM, C)
    x_t = jnp.sum(jnp.where(col == t, x, 0), axis=-1,
                  keepdims=True).astype(jnp.float32)                     # (TM, 1)

    # ---- pass 2: f32 accumulation.  Row sum and shifted exp-sum share the
    # single upcast; no (TM, C) intermediate is reused across passes.
    x32 = x.astype(jnp.float32)
    sum_x = jnp.sum(x32, axis=-1, keepdims=True)                         # (TM, 1)
    lse = jnp.log(jnp.sum(jnp.exp(x32 - m), axis=-1, keepdims=True))     # (TM, 1)

    # sum_c log_softmax(x)_c = sum_x - C*m - C*lse
    sum_logp = sum_x - c * m - c * lse
    valid = (t != ignore_index).astype(jnp.float32)
    nll = (m + lse - x_t) * valid            # -log_softmax[target]; 0 for ignored rows

    # single consolidated (TM, 3) store -> one writeback per grid step
    out_ref[...] = jnp.concatenate([-sum_logp, nll, valid], axis=-1)


def _round_up(a, b):
    return -(-a // b) * b


def _pick_tiling(n, c, itemsize):
    """Pick (block_rows, vmem_limit_bytes) from the generation's VMEM budget."""
    sub = 8 * max(1, 4 // itemsize)          # sublane multiple: 8 f32, 16 bf16
    try:
        vmem_cap = int(pltpu.get_tpu_info().vmem_capacity_bytes)
    except Exception:
        vmem_cap = 64 * 1024 * 1024          # conservative fallback (v7x per-TC)
    # 3/4 of capacity: ~96 MiB on 128 MiB parts (v5e/v6e), ~48 MiB on v7x.
    vmem_limit = vmem_cap * 3 // 4
    budget = vmem_limit // 2                 # working set ~half the scoped limit
    # Per logits row: double-buffered native-dtype input stream + ~1 f32 (TM, C)
    # intermediate for the exp pass (no materialized shifted tile anymore).
    per_row = c * (2 * itemsize + 4) + 64
    tm = max(sub, (budget // per_row) // sub * sub)
    tm = min(tm, 2048)
    # Keep >= ~8 grid steps when N allows (>= ~4 per v7x core) so the input DMA
    # for step i+1 overlaps compute on step i.
    eighth = _round_up(max(1, -(-n // 8)), sub)
    tm = min(tm, max(sub, eighth))
    return tm, vmem_limit


def label_smoothing_cross_entropy(output, target, *, eps=0.1, reduction="mean",
                                  ignore_index=-100, block_rows=None):
    """Matches bert4torch LabelSmoothingCrossEntropy.forward."""
    n, c = output.shape
    itemsize = jnp.dtype(output.dtype).itemsize
    sub = 8 * max(1, 4 // itemsize)

    if block_rows is None:
        tm, vmem_limit = _pick_tiling(n, c, itemsize)
    else:
        tm = int(block_rows)
        assert tm % sub == 0, f"block_rows must be a multiple of {sub}"
        _, vmem_limit = _pick_tiling(n, c, itemsize)

    grid = (pl.cdiv(n, tm),)                 # ragged last block handled by Pallas masking

    tgt = target.astype(jnp.int32).reshape(n, 1)

    kernel = functools.partial(_lsce_kernel, ignore_index=ignore_index)

    cost = pl.CostEstimate(
        flops=6 * n * c,
        transcendentals=n * c + n,           # exp per element + log per row
        bytes_accessed=n * c * itemsize + n * 4 + n * 3 * 4,
    )

    stats = pl.pallas_call(
        kernel,
        out_shape=jax.ShapeDtypeStruct((n, 3), jnp.float32),
        grid_spec=pltpu.PrefetchScalarGridSpec(
            num_scalar_prefetch=0,
            grid=grid,
            in_specs=[
                pl.BlockSpec((tm, c), lambda i: (i, 0)),
                pl.BlockSpec((tm, 1), lambda i: (i, 0)),
            ],
            out_specs=pl.BlockSpec((tm, 3), lambda i: (i, 0)),
        ),
        compiler_params=pltpu.CompilerParams(
            dimension_semantics=("parallel",),
            vmem_limit_bytes=vmem_limit,
        ),
        cost_estimate=cost,
    )(output, tgt)

    smooth = stats[:, 0]            # -sum_c log_softmax            per row
    nll = stats[:, 1]               # -log_softmax[target]          per row (0 if ignored)
    valid = stats[:, 2]

    if reduction == "sum":
        loss_smooth = jnp.sum(smooth)
        loss_nll = jnp.sum(nll)
    elif reduction == "mean":
        loss_smooth = jnp.mean(smooth)               # torch: mean over ALL rows
        loss_nll = jnp.sum(nll) / jnp.sum(valid)     # torch: mean over valid rows
    else:  # 'none'
        loss_smooth = smooth
        loss_nll = nll

    return loss_smooth * eps / c + (1.0 - eps) * loss_nll


def _reference(output, target, *, eps=0.1, reduction="mean", ignore_index=-100):
    # pure-JAX reference mirroring the PyTorch forward
    c = output.shape[-1]
    log_preds = jax.nn.log_softmax(output.astype(jnp.float32), axis=-1)
    if reduction == "sum":
        loss = -jnp.sum(log_preds)
    else:
        loss = -jnp.sum(log_preds, axis=-1)
        if reduction == "mean":
            loss = jnp.mean(loss)
    valid = (target != ignore_index)
    picked = jnp.take_along_axis(
        log_preds, jnp.clip(target, 0, c - 1)[:, None].astype(jnp.int32), axis=-1)[:, 0]
    per_row_nll = jnp.where(valid, -picked, 0.0)
    if reduction == "sum":
        nll = jnp.sum(per_row_nll)
    elif reduction == "mean":
        nll = jnp.sum(per_row_nll) / jnp.sum(valid.astype(jnp.float32))
    else:
        nll = per_row_nll
    return loss * eps / c + (1.0 - eps) * nll


if __name__ == "__main__":
    key = jax.random.PRNGKey(0)
    k1, k2, k3, k4, k5, k6 = jax.random.split(key, 6)

    # case 1: mean reduction, ignore_index exercised, f32
    N, C = 8, 32
    logits = jax.random.normal(k1, (N, C), dtype=jnp.float32)
    target = jax.random.randint(k2, (N,), 0, C, dtype=jnp.int32)
    target = target.at[3].set(-100)
    loss = label_smoothing_cross_entropy(
        logits, target, eps=0.1, reduction="mean", ignore_index=-100)
    loss = jax.block_until_ready(loss)
    ref = _reference(logits, target, eps=0.1, reduction="mean", ignore_index=-100)
    assert jnp.allclose(loss, ref, atol=1e-5, rtol=1e-5), (loss, ref)

    # case 2: sum reduction, N not a multiple of the row tile (exercises the
    # unpadded ragged last block and a multi-step grid)
    N2, C2 = 10, 32
    logits2 = jax.random.normal(k3, (N2, C2), dtype=jnp.float32)
    target2 = jax.random.randint(k4, (N2,), 0, C2, dtype=jnp.int32)
    target2 = target2.at[0].set(-100)
    loss2 = label_smoothing_cross_entropy(
        logits2, target2, eps=0.1, reduction="sum", ignore_index=-100)
    loss2 = jax.block_until_ready(loss2)
    ref2 = _reference(logits2, target2, eps=0.1, reduction="sum", ignore_index=-100)
    assert jnp.allclose(loss2, ref2, atol=1e-4, rtol=1e-5), (loss2, ref2)

    # case 3: bf16 logits (native-dtype max/gather passes), mean reduction,
    # ragged grid with the bf16 sublane multiple (16)
    N3, C3 = 20, 64
    logits3 = jax.random.normal(k5, (N3, C3), dtype=jnp.float32).astype(jnp.bfloat16)
    target3 = jax.random.randint(k6, (N3,), 0, C3, dtype=jnp.int32)
    target3 = target3.at[7].set(-100)
    loss3 = label_smoothing_cross_entropy(
        logits3, target3, eps=0.1, reduction="mean", ignore_index=-100)
    loss3 = jax.block_until_ready(loss3)
    ref3 = _reference(logits3, target3, eps=0.1, reduction="mean", ignore_index=-100)
    assert jnp.allclose(loss3, ref3, atol=1e-3, rtol=1e-4), (loss3, ref3)

    print("KERNEL_OK")
</pallas_src>

<mosaic_0001>
module attributes {stable_mosaic.version = 11 : i64} {
  func.func @_lsce_kernel(%arg0: i32, %arg1: memref<8x32xf32, #tpu.memory_space<vmem>>, %arg2: memref<8x1xi32, #tpu.memory_space<vmem>>, %arg3: memref<8x3xf32, #tpu.memory_space<vmem>>) attributes {dimension_semantics = [#tpu.dimension_semantics<parallel>], iteration_bounds = array<i64: 1>, scalar_prefetch = 0 : i64, scratch_operands = 0 : i64, tpu.core_type = #tpu.core_type<tc>, window_params = [{transform_indices = @transform_0, window_bounds = array<i64: 8, 32>}, {transform_indices = @transform_1, window_bounds = array<i64: 8, 1>}, {transform_indices = @transform_2, window_bounds = array<i64: 8, 3>}]} {
    %c0 = arith.constant 0 : index
    %c0_0 = arith.constant 0 : index
    %0 = vector.load %arg1[%c0, %c0_0] : memref<8x32xf32, #tpu.memory_space<vmem>>, vector<8x32xf32>
    %c0_1 = arith.constant 0 : index
    %c0_2 = arith.constant 0 : index
    %1 = vector.load %arg2[%c0_1, %c0_2] : memref<8x1xi32, #tpu.memory_space<vmem>>, vector<8x1xi32>
    %cst = arith.constant dense<0xFF800000> : vector<8xf32>
    %2 = vector.multi_reduction <maximumf>, %0, %cst [1] : vector<8x32xf32> to vector<8xf32>
    %3 = vector.shape_cast %2 : vector<8xf32> to vector<8x1xf32>
    %4 = tpu.iota {dimensions = array<i32: 1>} : vector<8x32xi32>
    %5 = vector.broadcast %1 : vector<8x1xi32> to vector<8x32xi32>
    %6 = arith.cmpi eq, %4, %5 : vector<8x32xi32>
    %c0_i32 = arith.constant 0 : i32
    %7 = arith.sitofp %c0_i32 : i32 to f32
    %8 = vector.broadcast %7 : f32 to vector<8x32xf32>
    %9 = arith.select %6, %0, %8 : vector<8x32xi1>, vector<8x32xf32>
    %cst_3 = arith.constant dense<0.000000e+00> : vector<8xf32>
    %10 = vector.multi_reduction <add>, %9, %cst_3 [1] : vector<8x32xf32> to vector<8xf32>
    %11 = vector.shape_cast %10 : vector<8xf32> to vector<8x1xf32>
    %cst_4 = arith.constant dense<0.000000e+00> : vector<8xf32>
    %12 = vector.multi_reduction <add>, %0, %cst_4 [1] : vector<8x32xf32> to vector<8xf32>
    %13 = vector.shape_cast %12 : vector<8xf32> to vector<8x1xf32>
    %14 = vector.broadcast %3 : vector<8x1xf32> to vector<8x32xf32>
    %15 = arith.subf %0, %14 : vector<8x32xf32>
    %16 = math.exp %15 : vector<8x32xf32>
    %cst_5 = arith.constant dense<0.000000e+00> : vector<8xf32>
    %17 = vector.multi_reduction <add>, %16, %cst_5 [1] : vector<8x32xf32> to vector<8xf32>
    %18 = vector.shape_cast %17 : vector<8xf32> to vector<8x1xf32>
    %19 = math.log %18 : vector<8x1xf32>
    %cst_6 = arith.constant 3.200000e+01 : f32
    %20 = vector.broadcast %cst_6 : f32 to vector<8x1xf32>
    %21 = arith.mulf %20, %3 : vector<8x1xf32>
    %22 = arith.subf %13, %21 : vector<8x1xf32>
    %cst_7 = arith.constant 3.200000e+01 : f32
    %23 = vector.broadcast %cst_7 : f32 to vector<8x1xf32>
    %24 = arith.mulf %23, %19 : vector<8x1xf32>
    %25 = arith.subf %22, %24 : vector<8x1xf32>
    %c-100_i32 = arith.constant -100 : i32
    %26 = vector.broadcast %c-100_i32 : i32 to vector<8x1xi32>
    %27 = arith.cmpi ne, %1, %26 : vector<8x1xi32>
    %28 = arith.extui %27 : vector<8x1xi1> to vector<8x1xi32>
    %29 = arith.sitofp %28 : vector<8x1xi32> to vector<8x1xf32>
    %30 = arith.addf %3, %19 : vector<8x1xf32>
    %31 = arith.subf %30, %11 : vector<8x1xf32>
    %32 = arith.mulf %31, %29 : vector<8x1xf32>
    %cst_8 = arith.constant 0.000000e+00 : f32
    %33 = vector.broadcast %cst_8 : f32 to vector<8x1xf32>
    %34 = arith.subf %33, %25 : vector<8x1xf32>
    %35 = tpu.concatenate %34, %32, %29 in 1 : vector<8x1xf32>, vector<8x1xf32>, vector<8x1xf32> -> vector<8x3xf32>
    %c0_9 = arith.constant 0 : index
    %c0_10 = arith.constant 0 : index
    %36 = vector.load %arg3[%c0_9, %c0_10] : memref<8x3xf32, #tpu.memory_space<vmem>>, vector<8x3xf32>
    tpu.vector_store %arg3[%c0_9, %c0_10], %35 {strides = array<i32>} : memref<8x3xf32, #tpu.memory_space<vmem>>, vector<8x3xf32>,
    return
  }
  func.func @transform_0(%arg0: i32) -> (i32, i32) {
    %c0_i32 = arith.constant 0 : i32
    %c0_i32_0 = arith.constant 0 : i32
    return %arg0, %c0_i32 : i32, i32
  }
  func.func @transform_1(%arg0: i32) -> (i32, i32) {
    %c0_i32 = arith.constant 0 : i32
    %c0_i32_0 = arith.constant 0 : i32
    return %arg0, %c0_i32 : i32, i32
  }
  func.func @transform_2(%arg0: i32) -> (i32, i32) {
    %c0_i32 = arith.constant 0 : i32
    %c0_i32_0 = arith.constant 0 : i32
    return %arg0, %c0_i32 : i32, i32
  }
}

</mosaic_0001>

<llo_original>
// kernel: tpu_custom_call.1
$region0: #{tpu_custom_call.1}
  #allocation0 [shape = 'u32[]', space=smem, size = 0x4, offset = 0x4, fixed_abs, tag = 'smem constant byte address 0x4 - core index']
  #allocation1 [shape = 'u32[144,128]{1,0:T(1,128)}', space=vmem, size = 0x12000, scoped, tag = 'internal scratch']
  %s0 = inlined_call_operand.vmem [shape: f32[8,32], index: 0, kind: input, shape index: {}]
  %s1 = inlined_call_operand.vmem [shape: s32[8,1], index: 1, kind: input, shape index: {}]
  %s2 = inlined_call_operand.vmem [shape: f32[8,3], index: 2, kind: output, shape index: {}]
  %s3 = sld [smem:[#allocation0]]
  $region18: #{tpu_custom_call.1} parent=0
    _
  %s5 = ssub.s32 1, %s3
  %s6 = scalar_select 0, %s5, %s3
  // Predicated region
  $region2: #{tpu_custom_call.1} parent=0 // pred_check
    _
  $region3: #{tpu_custom_call.1} parent=0 // pred_check_branch
    %8 = sbr.rel (0) target = $region5
  $region4: #{tpu_custom_call.1} parent=0 // pred_region
    _
  $region5: #{tpu_custom_call.1} parent=0 // pred_fallthru
    _
  // Predicated region
  $region6: #{tpu_custom_call.1} parent=0 // pred_check
    _
  $region7: #{tpu_custom_call.1} parent=0 // pred_check_branch
    %10 = sbr.rel (0) target = $region9
  $region8: #{tpu_custom_call.1} parent=0 // pred_region
    _
  $region9: #{tpu_custom_call.1} parent=0 // pred_fallthru
    _
  %v11 = vld [vmem:[%s0] sm:$0xff]
  %v12 = vld [vmem:[%s1] sm:$0xff]
  %vm13 = vcmask 261120
  %v14 = vsel %vm13, %v11, -inf
  %15 = vmax.xlane.f32.xlu0 %v14
  %v16 = vpop.xlane.xlu0 %15
  %v17 = vlaneseq
  %v18 = vand.u32 %v17, 127
  %19 = vset.pattern.permute.xlu0 0
  %20 = vperm.xlu0 %19, %v12
  %v21 = vpop.permute.xlu0 %20
  %vm22 = vcmp.eq.s32.totalorder %v18, %v21
  %v23 = vsel %vm22, %v11, 0.0
  %v24 = vsel %vm13, %v23, 0.0
  %25 = vadd.xlane.f32.xlu0 %v24
  %v26 = vpop.xlane.xlu0 %25
  %v27 = vsel %vm13, %v11, 0.0
  %28 = vadd.xlane.f32.xlu0 %v27
  %v29 = vpop.xlane.xlu0 %28
  %v30 = vsub.f32 %v11, %v16
  %v31 = vmul.f32 %v30, 1.442695
  %v32 = vpow.pop %v31
  %v33 = vsel %vm13, %v32, 0.0
  %34 = vadd.xlane.f32.xlu0 %v33
  %v35 = vpop.xlane.xlu0 %34
  %v36 = vlog2.pop %v35
  %v37 = vmul.f32 %v36, 0.6931472
  %v38 = vmul.f32 %v16, 32.0
  %v39 = vsub.f32 %v29, %v38
  %v40 = vmul.f32 %v37, 32.0
  %v41 = vsub.f32 %v39, %v40
  %vm42 = vcmp.ne.s32.totalorder %v12, 4294967196
  %v43 = vsel %vm42, 1, 0
  %v44 = vcvt.s32.f32 %v43
  %v45 = vadd.f32 %v16, %v37
  %v46 = vsub.f32 %v45, %v26
  %v47 = vmul.f32 %v46, %v44
  %v48 = vsub.f32 0.0, %v41
  %50 = vrot.lane.b32.xlu0 %v47, 1
  %v51 = vpop.permute.xlu0 %50
  %54 = vrot.lane.b32.xlu0 %v44, 2
  %v55 = vpop.permute.xlu0 %54
  %vm57 = vcmask 7168
  %v58 = vsel %vm57, %v48, %v51
  %vm59 = vcmask 15360
  %v60 = vsel %vm59, %v58, %v55
  %vm61 = vcmask 23552
  %62 = vst.msk [vmem:[%s2] sm:$0xff] %vm61, %v60
  // Predicated region
  $region10: #{tpu_custom_call.1} parent=0 // pred_check
    _
  $region11: #{tpu_custom_call.1} parent=0 // pred_check_branch
    %64 = sbr.rel (0) target = $region13
  $region12: #{tpu_custom_call.1} parent=0 // pred_region
    _
  $region13: #{tpu_custom_call.1} parent=0 // pred_fallthru
    _
  // Predicated region
  $region14: #{tpu_custom_call.1} parent=0 // pred_check
    _
  $region15: #{tpu_custom_call.1} parent=0 // pred_check_branch
    %66 = sbr.rel (0) target = $region17
  $region16: #{tpu_custom_call.1} parent=0 // pred_region
    _
  $region17: #{tpu_custom_call.1} parent=0 // pred_fallthru
    _

</llo_original>
